<compile_context>
chip_gen: v6e
topology: v6e:2x2x1
jax: 0.10.0
libtpu: 0.0.40
codegen_flags: <defaults>
</compile_context>

<pallas_src>
import math

import jax
import jax.numpy as jnp
from jax import lax
from jax.experimental import pallas as pl
from jax.experimental.pallas import tpu as pltpu

_GN_EPS = 1e-5            # PyTorch GroupNorm default
_NUM_GROUPS = 32          # hardcoded in the reference ResBlock
_ACT_DTYPE = jnp.bfloat16 # inter-op activation dtype
_VMEM_LIMIT = 64 * 1024 * 1024


def _round_up(x, m):
    return ((x + m - 1) // m) * m


# ---------------------------------------------------------------------------
# Pallas kernels
# ---------------------------------------------------------------------------

def _matmul_bias_kernel(x_ref, w_ref, b_ref, o_ref):
    # All conv taps already folded into the contraction dim: one MXU matmul,
    # bias fused, bf16 store.
    acc = jnp.dot(x_ref[...], w_ref[...], preferred_element_type=jnp.float32)
    o_ref[...] = (acc + b_ref[...]).astype(o_ref.dtype)


def _make_conv3x3_kernel(with_residual):
    """3x3 / stride-1 / pad-1 conv over one padded image resident in VMEM.

    x_ref: (H_pad, W_pad, Cin) bf16   (batch dim squeezed by the BlockSpec)
    w_ref: (9, Cin, Cout) bf16        (grid-invariant: DMA'd once, reused)
    b_ref: (1, Cout) f32
    r_ref: (H_out, W_out, Cout) bf16  (optional fused residual)
    o_ref: (H_out, W_out, Cout) bf16
    """
    def kernel(x_ref, w_ref, b_ref, *rest):
        if with_residual:
            r_ref, o_ref = rest
        else:
            (o_ref,) = rest
        H_out, W_out, Cout = o_ref.shape
        bias = b_ref[...]                                   # (1, Cout) f32, hoisted

        def row_body(h, carry):
            acc = jnp.zeros((W_out, Cout), jnp.float32)
            for kh in range(3):
                xrow = x_ref[h + kh]                        # (W_pad, Cin) bf16
                for kw in range(3):
                    acc = acc + jnp.dot(
                        xrow[kw:kw + W_out, :], w_ref[kh * 3 + kw],
                        preferred_element_type=jnp.float32)
            acc = acc + bias
            if with_residual:
                acc = acc + r_ref[h].astype(jnp.float32)
            o_ref[h] = acc.astype(o_ref.dtype)
            return carry

        lax.fori_loop(0, H_out, row_body, 0)

    return kernel


def _groupnorm_silu_kernel(x_ref, a_ref, at_ref, g_ref, b_ref, o_ref):
    # Fused GroupNorm(eps=1e-5, biased var) + SiLU for one (sample, group-split)
    # block. bf16 in/out, all statistics and normalization math in f32.
    x = x_ref[0].astype(jnp.float32)                        # (HW, Cb)
    hw, cb = x.shape
    gb = a_ref.shape[1]
    cnt = float(hw * (cb // gb))

    colsum = jnp.sum(x, axis=0, keepdims=True)              # (1, Cb)
    colsq = jnp.sum(x * x, axis=0, keepdims=True)           # (1, Cb)
    # per-group stats via tiny one-hot matmuls (no lane-dim reshapes)
    gsum = jnp.dot(colsum, a_ref[...], preferred_element_type=jnp.float32)
    gsq = jnp.dot(colsq, a_ref[...], preferred_element_type=jnp.float32)
    gmean = gsum / cnt
    gvar = gsq / cnt - gmean * gmean                        # biased variance (PyTorch)
    ginv = lax.rsqrt(gvar + _GN_EPS)
    mean_c = jnp.dot(gmean, at_ref[...], preferred_element_type=jnp.float32)
    inv_c = jnp.dot(ginv, at_ref[...], preferred_element_type=jnp.float32)

    y = (x - mean_c) * inv_c * g_ref[...] + b_ref[...]
    o_ref[0] = (y * jax.nn.sigmoid(y)).astype(o_ref.dtype)  # fused SiLU


# ---------------------------------------------------------------------------
# Kernel wrappers
# ---------------------------------------------------------------------------

def _choose_row_tile(M, Kc, Cout, target=512, vmem_budget=40 * 1024 * 1024):
    """Row tile: <= target, multiple of 8, >=2 grid steps, fits a VMEM budget."""
    tm = min(target, _round_up(M, 8))
    if M >= 16 and _round_up(M, tm) // tm < 2:
        tm = _round_up((M + 1) // 2, 8)          # >=2 parallel steps (v7x megacore)
    def est(t):  # double-buffered x/out blocks + (possibly double-buffered) weights
        return 2 * (t * Kc + t * Cout) * 2 + 2 * Kc * Cout * 2
    while tm > 64 and est(tm) > vmem_budget:
        tm //= 2
    return max(8, (tm // 8) * 8)


def conv_folded(x, w_taps, b, *, ksize, stride, padding):
    """Conv with all K*K taps folded into the matmul contraction dim.

    Used for the 7x7 stem (Cin=3: contraction 147 -> lane-padded to 256) and the
    4x4/stride-2 down-convs (contraction 16*Cin: full MXU depth, <=4x im2col).
    x: (N, H, W, Cin) bf16 ; w_taps: (K*K, Cin, Cout) bf16 ; b: (Cout,) f32.
    """
    N, H, W, Cin = x.shape
    K = ksize
    KK, wCin, Cout = w_taps.shape
    assert KK == K * K and wCin == Cin
    H_out = (H + 2 * padding - K) // stride + 1
    W_out = (W + 2 * padding - K) // stride + 1
    M = N * H_out * W_out
    Kc = K * K * Cin

    xp = jnp.pad(x, ((0, 0), (padding, padding), (padding, padding), (0, 0)))
    cols = []
    for kh in range(K):
        for kw in range(K):
            cols.append(xp[:, kh:kh + (H_out - 1) * stride + 1:stride,
                           kw:kw + (W_out - 1) * stride + 1:stride, :])
    xcol = jnp.stack(cols, axis=-2).reshape(M, Kc).astype(_ACT_DTYPE)
    w2 = w_taps.reshape(Kc, Cout).astype(_ACT_DTYPE)

    # Pad the contraction dim to a lane-dense multiple of 128 (zero rows: exact).
    Kc_p = _round_up(Kc, 128)
    if Kc_p != Kc:
        xcol = jnp.pad(xcol, ((0, 0), (0, Kc_p - Kc)))
        w2 = jnp.pad(w2, ((0, Kc_p - Kc), (0, 0)))

    tm = _choose_row_tile(M, Kc_p, Cout)
    M_pad = _round_up(M, tm)
    if M_pad != M:
        xcol = jnp.pad(xcol, ((0, M_pad - M), (0, 0)))   # pad rows -> bias-only junk, sliced off

    out = pl.pallas_call(
        _matmul_bias_kernel,
        out_shape=jax.ShapeDtypeStruct((M_pad, Cout), _ACT_DTYPE),
        grid=(M_pad // tm,),
        in_specs=[
            pl.BlockSpec((tm, Kc_p), lambda i: (i, 0)),
            pl.BlockSpec((Kc_p, Cout), lambda i: (0, 0)),   # grid-invariant weight
            pl.BlockSpec((1, Cout), lambda i: (0, 0)),
        ],
        out_specs=pl.BlockSpec((tm, Cout), lambda i: (i, 0)),
        compiler_params=pltpu.CompilerParams(
            dimension_semantics=("parallel",),
            vmem_limit_bytes=_VMEM_LIMIT),
    )(xcol, w2, b.reshape(1, Cout).astype(jnp.float32))
    return out[:M].reshape(N, H_out, W_out, Cout)


def conv3x3(x, w_taps, b, residual=None):
    """3x3/stride-1/pad-1 conv, no im2col: one padded image per grid step.

    x: (N, H, W, Cin) bf16 ; w_taps: (9, Cin, Cout) bf16 ; b: (Cout,) f32
    residual: optional (N, H, W, Cout), added in the epilogue (ResBlock skip).
    """
    N, H, W, Cin = x.shape
    KK, wCin, Cout = w_taps.shape
    assert KK == 9 and wCin == Cin
    xp = jnp.pad(x.astype(_ACT_DTYPE), ((0, 0), (1, 1), (1, 1), (0, 0)))
    H_pad, W_pad = H + 2, W + 2
    # TODO(synk): for very large feature maps (e.g. 256^2 level-0 on v7x) tile over H
    # with halo rows via manual DMA (memory_space=pl.ANY + make_async_copy) instead
    # of one full padded image per block.
    # TODO(synk): for Cout < 128 levels the output stores are lane-masked; a
    # lane-dense folded out_spec would shave store overhead further.

    in_specs = [
        pl.BlockSpec((None, H_pad, W_pad, Cin), lambda n: (n, 0, 0, 0)),
        pl.BlockSpec((9, Cin, Cout), lambda n: (0, 0, 0)),   # grid-invariant weight
        pl.BlockSpec((1, Cout), lambda n: (0, 0)),
    ]
    args = [xp, w_taps.astype(_ACT_DTYPE), b.reshape(1, Cout).astype(jnp.float32)]
    if residual is not None:
        in_specs.append(pl.BlockSpec((None, H, W, Cout), lambda n: (n, 0, 0, 0)))
        args.append(residual.astype(_ACT_DTYPE))

    return pl.pallas_call(
        _make_conv3x3_kernel(residual is not None),
        out_shape=jax.ShapeDtypeStruct((N, H, W, Cout), _ACT_DTYPE),
        grid=(N,),
        in_specs=in_specs,
        out_specs=pl.BlockSpec((None, H, W, Cout), lambda n: (n, 0, 0, 0)),
        compiler_params=pltpu.CompilerParams(
            dimension_semantics=("parallel",),
            vmem_limit_bytes=_VMEM_LIMIT),
    )(*args)


def _group_onehot(C, G):
    cg = C // G
    return (jnp.arange(C)[:, None] // cg == jnp.arange(G)[None, :]).astype(jnp.float32)


def _gn_channel_splits(HW, C, G, budget=2 * 1024 * 1024):
    """How many channel/group splits so one bf16 block stays under `budget`."""
    s = 1
    while (HW * (C // s) * 2 > budget and G % (2 * s) == 0 and C // (2 * s) >= 32):
        s *= 2
    return s


def groupnorm_silu(x, gamma, beta, num_groups=_NUM_GROUPS):
    """Fused GroupNorm(num_groups) + SiLU. x: (N, H, W, C) bf16 -> bf16."""
    N, H, W, C = x.shape
    assert C % num_groups == 0, "GroupNorm(32, ch) requires ch % 32 == 0"
    HW = H * W
    S = _gn_channel_splits(HW, C, num_groups)   # groups are channel-contiguous ->
    A = _group_onehot(C, num_groups)            # diagonal (s, s) one-hot blocks
    # TODO(synk): for extreme HW a two-pass HW-tiled variant (stats accumulation,
    # then normalize) would bound VMEM further; channel/group splitting + bf16
    # blocks cover the encoder's feature-map sizes.
    out = pl.pallas_call(
        _groupnorm_silu_kernel,
        out_shape=jax.ShapeDtypeStruct((N, HW, C), _ACT_DTYPE),
        grid=(N, S),
        in_specs=[
            pl.BlockSpec((1, HW, C // S), lambda n, s: (n, 0, s)),
            pl.BlockSpec((C // S, num_groups // S), lambda n, s: (s, s)),
            pl.BlockSpec((num_groups // S, C // S), lambda n, s: (s, s)),
            pl.BlockSpec((1, C // S), lambda n, s: (0, s)),
            pl.BlockSpec((1, C // S), lambda n, s: (0, s)),
        ],
        out_specs=pl.BlockSpec((1, HW, C // S), lambda n, s: (n, 0, s)),
        compiler_params=pltpu.CompilerParams(
            dimension_semantics=("parallel", "parallel"),
            vmem_limit_bytes=_VMEM_LIMIT),
    )(x.reshape(N, HW, C).astype(_ACT_DTYPE), A, A.T,
      gamma.reshape(1, C).astype(jnp.float32), beta.reshape(1, C).astype(jnp.float32))
    return out.reshape(N, H, W, C)


# ---------------------------------------------------------------------------
# Model glue (matches the PyTorch EncoderCNN / ResBlock structure)
# ---------------------------------------------------------------------------

def res_block(p, x):
    # x + Sequential(GN, SiLU, Conv3x3, GN, SiLU, Conv3x3)(x)
    h = groupnorm_silu(x, p["gn1_g"], p["gn1_b"])
    h = conv3x3(h, p["conv1_w"], p["conv1_b"])
    h = groupnorm_silu(h, p["gn2_g"], p["gn2_b"])
    return conv3x3(h, p["conv2_w"], p["conv2_b"], residual=x)   # fused skip add


def encoder_forward(params, x_nchw):
    x = jnp.transpose(x_nchw, (0, 2, 3, 1)).astype(_ACT_DTYPE)  # NCHW -> NHWC bf16
    x = conv_folded(x, params["stem_w"], params["stem_b"], ksize=7, stride=1, padding=3)
    for lvl in params["levels"]:
        x = res_block(lvl["res1"], x)
        x = res_block(lvl["res2"], x)
        x = conv_folded(x, lvl["down_w"], lvl["down_b"], ksize=4, stride=2, padding=1)
    x = res_block(params["final_res"], x)
    return jnp.transpose(x, (0, 3, 1, 2)).astype(jnp.float32)   # NHWC -> NCHW


def _conv_init(key, ksize, cin, cout):
    # Scale only matters for numerics, not semantics. Weights stored bf16,
    # (taps, Cin, Cout) layout; accumulation stays f32 inside the kernels.
    scale = 1.0 / math.sqrt(cin * ksize * ksize)
    w = scale * jax.random.normal(key, (ksize * ksize, cin, cout), dtype=jnp.float32)
    return w.astype(jnp.bfloat16)


def _resblock_init(key, ch):
    k1, k2 = jax.random.split(key)
    return {
        "gn1_g": jnp.ones((ch,), jnp.float32),
        "gn1_b": jnp.zeros((ch,), jnp.float32),
        "conv1_w": _conv_init(k1, 3, ch, ch),
        "conv1_b": jnp.zeros((ch,), jnp.float32),
        "gn2_g": jnp.ones((ch,), jnp.float32),
        "gn2_b": jnp.zeros((ch,), jnp.float32),
        "conv2_w": _conv_init(k2, 3, ch, ch),
        "conv2_b": jnp.zeros((ch,), jnp.float32),
    }


def init_params(key, in_ch=3, base_ch=64, levels=4):
    keys = jax.random.split(key, levels + 2)
    params = {
        "stem_w": _conv_init(keys[0], 7, in_ch, base_ch),
        "stem_b": jnp.zeros((base_ch,), jnp.float32),
        "levels": [],
    }
    ch = base_ch
    for i in range(levels):
        k1, k2, k3 = jax.random.split(keys[1 + i], 3)
        params["levels"].append({
            "res1": _resblock_init(k1, ch),
            "res2": _resblock_init(k2, ch),
            "down_w": _conv_init(k3, 4, ch, 2 * ch),
            "down_b": jnp.zeros((2 * ch,), jnp.float32),
        })
        ch *= 2
    params["final_res"] = _resblock_init(keys[-1], ch)
    return params


if __name__ == "__main__":
    # Small shapes consistent with the module (GroupNorm(32, ch) needs ch % 32 == 0).
    in_ch, base_ch, levels = 3, 32, 2
    B, H, W = 2, 16, 16

    root = jax.random.PRNGKey(0)
    k_params, k_x = jax.random.split(root)
    params = init_params(k_params, in_ch=in_ch, base_ch=base_ch, levels=levels)
    x = jax.random.normal(k_x, (B, in_ch, H, W), dtype=jnp.float32)

    y = encoder_forward(params, x)
    y = jax.block_until_ready(y)

    out_ch = base_ch * (2 ** levels)
    assert y.shape == (B, out_ch, H // (2 ** levels), W // (2 ** levels)), y.shape
    assert y.dtype == jnp.float32
    assert bool(jnp.all(jnp.isfinite(y)))
    print("KERNEL_OK")
</pallas_src>

<mosaic_0001>
module attributes {stable_mosaic.version = 11 : i64} {
  func.func @_matmul_bias_kernel(%arg0: i32, %arg1: memref<256x256xbf16, #tpu.memory_space<vmem>>, %arg2: memref<256x32xbf16, #tpu.memory_space<vmem>>, %arg3: memref<1x32xf32, #tpu.memory_space<vmem>>, %arg4: memref<256x32xbf16, #tpu.memory_space<vmem>>) attributes {dimension_semantics = [#tpu.dimension_semantics<parallel>], iteration_bounds = array<i64: 2>, scalar_prefetch = 0 : i64, scratch_operands = 0 : i64, tpu.core_type = #tpu.core_type<tc>, window_params = [{transform_indices = @transform_0, window_bounds = array<i64: 256, 256>}, {pipeline_mode = #tpu.pipeline_mode<synchronous>, transform_indices = @transform_1, window_bounds = array<i64: 256, 32>}, {pipeline_mode = #tpu.pipeline_mode<synchronous>, transform_indices = @transform_2, window_bounds = array<i64: 1, 32>}, {transform_indices = @transform_3, window_bounds = array<i64: 256, 32>}]} {
    %c0 = arith.constant 0 : index
    %c0_0 = arith.constant 0 : index
    %0 = vector.load %arg1[%c0, %c0_0] : memref<256x256xbf16, #tpu.memory_space<vmem>>, vector<256x256xbf16>
    %c0_1 = arith.constant 0 : index
    %c0_2 = arith.constant 0 : index
    %1 = vector.load %arg2[%c0_1, %c0_2] : memref<256x32xbf16, #tpu.memory_space<vmem>>, vector<256x32xbf16>
    %cst = arith.constant dense<0.000000e+00> : vector<256x32xf32>
    %2 = tpu.matmul %0, %1, %cst {dimension_numbers = #tpu.dot_dimension_numbers<[1], [0], [0], [1], [0, 0, 1, 1], [], []>} : vector<256x256xbf16>, vector<256x32xbf16>, vector<256x32xf32> -> vector<256x32xf32>
    %c0_3 = arith.constant 0 : index
    %c0_4 = arith.constant 0 : index
    %3 = vector.load %arg3[%c0_3, %c0_4] : memref<1x32xf32, #tpu.memory_space<vmem>>, vector<1x32xf32>
    %4 = vector.broadcast %3 : vector<1x32xf32> to vector<256x32xf32>
    %5 = arith.addf %2, %4 : vector<256x32xf32>
    %6 = arith.truncf %5 : vector<256x32xf32> to vector<256x32xbf16>
    %c0_5 = arith.constant 0 : index
    %c0_6 = arith.constant 0 : index
    %7 = vector.load %arg4[%c0_5, %c0_6] : memref<256x32xbf16, #tpu.memory_space<vmem>>, vector<256x32xbf16>
    tpu.vector_store %arg4[%c0_5, %c0_6], %6 {strides = array<i32>} : memref<256x32xbf16, #tpu.memory_space<vmem>>, vector<256x32xbf16>,
    return
  }
  func.func @transform_0(%arg0: i32) -> (i32, i32) {
    %c0_i32 = arith.constant 0 : i32
    %c0_i32_0 = arith.constant 0 : i32
    return %arg0, %c0_i32 : i32, i32
  }
  func.func @transform_1(%arg0: i32) -> (i32, i32) {
    %c0_i32 = arith.constant 0 : i32
    %c0_i32_0 = arith.constant 0 : i32
    %c0_i32_1 = arith.constant 0 : i32
    return %c0_i32, %c0_i32_0 : i32, i32
  }
  func.func @transform_2(%arg0: i32) -> (i32, i32) {
    %c0_i32 = arith.constant 0 : i32
    %c0_i32_0 = arith.constant 0 : i32
    %c0_i32_1 = arith.constant 0 : i32
    return %c0_i32, %c0_i32_0 : i32, i32
  }
  func.func @transform_3(%arg0: i32) -> (i32, i32) {
    %c0_i32 = arith.constant 0 : i32
    %c0_i32_0 = arith.constant 0 : i32
    return %arg0, %c0_i32 : i32, i32
  }
}

</mosaic_0001>

<llo_original>
// kernel: tpu_custom_call.1
$region0: #{tpu_custom_call.1}
  #allocation0 [shape = 'u32[]', space=smem, size = 0x4, offset = 0x4, fixed_abs, tag = 'smem constant byte address 0x4 - core index']
  #allocation1 [shape = 'u32[144,128]{1,0:T(1,128)}', space=vmem, size = 0x12000, scoped, tag = 'internal scratch']
  %s0 = inlined_call_operand.hbm [shape: bf16[512,256], index: 0, kind: input, shape index: {}]
  %s1 = inlined_call_operand.vmem [shape: bf16[256,32], index: 1, kind: input, shape index: {}]
  %s2 = inlined_call_operand.vmem [shape: f32[1,32], index: 2, kind: input, shape index: {}]
  %s3 = inlined_call_operand.vmem [shape: bf16[512,32], index: 3, kind: output, shape index: {}]
  %s4 = sld [smem:[#allocation0]]
  $region49: #{tpu_custom_call.1} parent=0
    _
  %s6 = ssub.s32 1, %s4
  %s7 = scalar_select 0, %s6, %s4
  $region1: #{tpu_custom_call.1} parent=0
    #allocation2 [shape = 'u8[262144]{0}', space=vmem, size = 0x40000, scoped, tag = 'input window, operand 0']
    #allocation3 [shape = 's32[2]{0}', space=sflag, size = 0x8, scoped, tag = 'scoped memory for tpu_custom_call.1']
    %8 = vsyncpa [#allocation3], 0
    %s9 = scalar_lea.sflag [#allocation3], 1
    %10 = vsyncpa %s9, 0
    loop: start=0, step=1, limit=4
    $region2: #{tpu_custom_call.1} parent=1 // loop_pre_header
      _
    $region3: #{tpu_custom_call.1} parent=1 // loop_header
      %s12 = sphi 0, %s16
      %p13 = scmp.ge.s32.totalorder %s12, 4
      %s22 = sphi 0, %s24
      %s25 = sphi 0, %s22
      %s26 = sphi 0, %s25
      %s42 = sphi 0, %s26
      %s46 = sphi 0, %s46
      %s48 = sphi 0, %s46
      %s49 = sphi 0, %s48
      %s63 = sphi 0, %s49
      %s67 = sphi 0, %s67
      %s69 = sphi 0, %s67
      %s70 = sphi 0, %s69
      %s84 = sphi 0, %s70
      %s90 = sphi 0, %s92
      %s93 = sphi 0, %s90
      %s94 = sphi 0, %s93
      %s110 = sphi 0, %s94
    $region4: #{tpu_custom_call.1} parent=1 // loop_header_branch
      %15 = sbr.rel (%p13) target = $region8
    $region5: #{tpu_custom_call.1} parent=1 // loop_body
      %s17 = ssub.s32 %s12, 1
      %s18 = ssub.s32 %s12, 2
      %s19 = sadd.s32 %s12, 1
      %s20 = ssub.s32 %s12, %s19
      %p21 = scmp.eq.s32.totalorder %s20, 0
      %s23 = sadd.s32 %s22, 1
      %s24 = scalar_select %p21, %s22, %s23
      %p27 = pneg %p21
      %p28 = scmp.eq.s32.totalorder %s12, 1
      %p29 = por %p27, %p28
      %p30 = scmp.ne.s32.totalorder %s22, %s25
      %p31 = scmp.eq.s32.totalorder %s12, 0
      %p32 = por %p30, %p31
      %p33 = scmp.ne.s32.totalorder %s22, %s25
      %p34 = scmp.eq.s32.totalorder %s17, 1
      %p35 = por %p33, %p34
      %p36 = scmp.ne.s32.totalorder %s25, %s26
      %p37 = scmp.eq.s32.totalorder %s17, 0
      %p38 = por %p36, %p37
      %p39 = scmp.ne.s32.totalorder %s25, %s26
      %p40 = scmp.eq.s32.totalorder %s18, 1
      %p41 = por %p39, %p40
      %p43 = scmp.ne.s32.totalorder %s26, %s42
      %p44 = scmp.eq.s32.totalorder %s18, 0
      %p45 = por %p43, %p44
      %s47 = sadd.s32 %s46, 1
      %p50 = scmp.eq.s32.totalorder %s12, 1
      %p51 = scmp.ne.s32.totalorder %s46, %s48
      %p52 = scmp.eq.s32.totalorder %s12, 0
      %p53 = por %p51, %p52
      %p54 = scmp.ne.s32.totalorder %s46, %s48
      %p55 = scmp.eq.s32.totalorder %s17, 1
      %p56 = por %p54, %p55
      %p57 = scmp.ne.s32.totalorder %s48, %s49
      %p58 = scmp.eq.s32.totalorder %s17, 0
      %p59 = por %p57, %p58
      %p60 = scmp.ne.s32.totalorder %s48, %s49
      %p61 = scmp.eq.s32.totalorder %s18, 1
      %p62 = por %p60, %p61
      %p64 = scmp.ne.s32.totalorder %s49, %s63
      %p65 = scmp.eq.s32.totalorder %s18, 0
      %p66 = por %p64, %p65
      %s68 = sadd.s32 %s67, 1
      %p71 = scmp.eq.s32.totalorder %s12, 1
      %p72 = scmp.ne.s32.totalorder %s67, %s69
      %p73 = scmp.eq.s32.totalorder %s12, 0
      %p74 = por %p72, %p73
      %p75 = scmp.ne.s32.totalorder %s67, %s69
      %p76 = scmp.eq.s32.totalorder %s17, 1
      %p77 = por %p75, %p76
      %p78 = scmp.ne.s32.totalorder %s69, %s70
      %p79 = scmp.eq.s32.totalorder %s17, 0
      %p80 = por %p78, %p79
      %p81 = scmp.ne.s32.totalorder %s69, %s70
      %p82 = scmp.eq.s32.totalorder %s18, 1
      %p83 = por %p81, %p82
      %p85 = scmp.ne.s32.totalorder %s70, %s84
      %p86 = scmp.eq.s32.totalorder %s18, 0
      %p87 = por %p85, %p86
      %s88 = ssub.s32 %s12, %s19
      %p89 = scmp.eq.s32.totalorder %s88, 0
      %s91 = sadd.s32 %s90, 1
      %s92 = scalar_select %p89, %s90, %s91
      %p95 = pneg %p89
      %p96 = scmp.eq.s32.totalorder %s12, 1
      %p97 = por %p95, %p96
      %p98 = scmp.ne.s32.totalorder %s90, %s93
      %p99 = scmp.eq.s32.totalorder %s12, 0
      %p100 = por %p98, %p99
      %p101 = scmp.ne.s32.totalorder %s90, %s93
      %p102 = scmp.eq.s32.totalorder %s17, 1
      %p103 = por %p101, %p102
      %p104 = scmp.ne.s32.totalorder %s93, %s94
      %p105 = scmp.eq.s32.totalorder %s17, 0
      %p106 = por %p104, %p105
      %p107 = scmp.ne.s32.totalorder %s93, %s94
      %p108 = scmp.eq.s32.totalorder %s18, 1
      %p109 = por %p107, %p108
      %p111 = scmp.ne.s32.totalorder %s94, %s110
      %p112 = scmp.eq.s32.totalorder %s18, 0
      %p113 = por %p111, %p112
      %p114 = scmp.le.s32.totalorder 1, %s12
      %p115 = scmp.lt.s32.totalorder %s12, 3
      %p116 = pnand %p114, %p115
      %p117 = pneg %p116
      // Predicated region
      $region9: #{tpu_custom_call.1} parent=5 // pred_check
        _
      $region10: #{tpu_custom_call.1} parent=5 // pred_check_branch
        %119 = sbr.rel (%p116) target = $region12
      $region11: #{tpu_custom_call.1} parent=5 // pred_region
        %s120 = ssub.s32 %s12, 1
        // Predicated region
        $region13: #{tpu_custom_call.1} parent=11 // pred_check
          %p121 = pneg %p59
        $region14: #{tpu_custom_call.1} parent=11 // pred_check_branch
          %123 = sbr.rel (%p121) target = $region16
        $region15: #{tpu_custom_call.1} parent=11 // pred_region
          _
        $region16: #{tpu_custom_call.1} parent=11 // pred_fallthru
          _
        // Predicated region
        $region17: #{tpu_custom_call.1} parent=11 // pred_check
          %p124 = pneg %p80
        $region18: #{tpu_custom_call.1} parent=11 // pred_check_branch
          %126 = sbr.rel (%p124) target = $region20
        $region19: #{tpu_custom_call.1} parent=11 // pred_region
          _
        $region20: #{tpu_custom_call.1} parent=11 // pred_fallthru
          _
      $region12: #{tpu_custom_call.1} parent=5 // pred_fallthru
        _
      %p127 = scmp.lt.s32.totalorder %s12, 2
      // Predicated region
      $region21: #{tpu_custom_call.1} parent=5 // pred_check
        %p128 = pneg %p127
      $region22: #{tpu_custom_call.1} parent=5 // pred_check_branch
        %130 = sbr.rel (%p128) target = $region24
      $region23: #{tpu_custom_call.1} parent=5 // pred_region
        // Predicated region
        $region25: #{tpu_custom_call.1} parent=23 // pred_check
          %p131 = pneg %p32
        $region26: #{tpu_custom_call.1} parent=23 // pred_check_branch
          %133 = sbr.rel (%p131) target = $region28
        $region27: #{tpu_custom_call.1} parent=23 // pred_region
          %s134 = sand.u32 %s22, 1
          %s135 = scalar_lea.sflag [#allocation3], %s134
          %s136 = sand.u32 %s22, 1
          %s137 = smul.addr %s136, 256
          %s138 = scalar_lea.vmem [#allocation2], %s137
          %s139 = smul.u32 32, %s12
          %s141 = ssub.s32 4096, 4096
          %142 = vsyncadd %s135, %s141
          %s143 = smul.addr %s139, 2
          %s144 = smul.addr %s143, 64
          %s145 = scalar_lea.hbm %s0, %s144
          %s146 = sshll.u32 %s138, 4
          %s147 = int_to_ptr.vmem [resolvable:$true] %s146
          %152 = dma.hbm_to_vmem [thread:$0]  %s145, 4096, %s147, %s135, 128, 128, 8
        $region28: #{tpu_custom_call.1} parent=23 // pred_fallthru
          _
      $region24: #{tpu_custom_call.1} parent=5 // pred_fallthru
        _
      %p153 = scmp.le.s32.totalorder 1, %s12
      %p154 = scmp.lt.s32.totalorder %s12, 3
      %p155 = pnand %p153, %p154
      %p156 = pneg %p155
      // Predicated region
      $region29: #{tpu_custom_call.1} parent=5 // pred_check
        _
      $region30: #{tpu_custom_call.1} parent=5 // pred_check_branch
        %158 = sbr.rel (%p155) target = $region32
      $region31: #{tpu_custom_call.1} parent=5 // pred_region
        %s159 = ssub.s32 %s12, 1
        %s160 = sand.u32 %s25, 1
        %s161 = scalar_lea.sflag [#allocation3], %s160
        %s162 = sand.u32 %s25, 1
        %s163 = smul.addr %s162, 256
        %s164 = scalar_lea.vmem [#allocation2], %s163
        // Predicated region
        $region33: #{tpu_custom_call.1} parent=31 // pred_check
          %p165 = pneg %p38
        $region34: #{tpu_custom_call.1} parent=31 // pred_check_branch
          %167 = sbr.rel (%p165) target = $region36
        $region35: #{tpu_custom_call.1} parent=31 // pred_region
          %168 = dma.done %s161, 4096
        $region36: #{tpu_custom_call.1} parent=31 // pred_fallthru
          _
        %s169 = sand.u32 %s25, 1
        %s170 = scalar_lea.sflag [#allocation3], %s169
        %s171 = sand.u32 %s25, 1
        %s172 = smul.addr %s171, 256
        %s173 = scalar_lea.vmem [#allocation2], %s172
        %p174 = pneg %p38
        %p175 = pneg %p35
        %p176 = pneg %p59
        %p177 = pneg %p56
        %p178 = pneg %p80
        %p179 = pneg %p77
        %p180 = pneg %p106
        %p181 = pneg %p103
        %s182 = smul.u32 32, %s17
        %p183 = scmp.lt.s32.totalorder %s182, 63
        %s184 = scalar_select %p183, %s182, 63
        %s185 = smul.addr %s184, 4
        %s186 = scalar_lea.vmem %s3, %s185
        %s187 = smul.u32 32, %s17
        %s188 = smul.u32 32, %s17
        %p189 = scmp.lt.s32.totalorder %s188, 63
        %s190 = scalar_select %p189, %s188, 63
        %s191 = smul.addr %s190, 4
        %s192 = scalar_lea.vmem %s3, %s191
        %s193 = smul.u32 32, %s17
        %v195 = vld [vmem:[%s164] sm:$0xff]
        %v196 = vld [vmem:[%s164 + $0x8] sm:$0xff]
        %v197 = vld [vmem:[%s164 + $0x10] sm:$0xff]
        %v198 = vld [vmem:[%s164 + $0x18] sm:$0xff]
        %v199 = vld [vmem:[%s164 + $0x20] sm:$0xff]
        %v200 = vld [vmem:[%s164 + $0x28] sm:$0xff]
        %v201 = vld [vmem:[%s164 + $0x30] sm:$0xff]
        %v202 = vld [vmem:[%s164 + $0x38] sm:$0xff]
        %v203 = vld [vmem:[%s164 + $0x40] sm:$0xff]
        %v204 = vld [vmem:[%s164 + $0x48] sm:$0xff]
        %v205 = vld [vmem:[%s164 + $0x50] sm:$0xff]
        %v206 = vld [vmem:[%s164 + $0x58] sm:$0xff]
        %v207 = vld [vmem:[%s164 + $0x60] sm:$0xff]
        %v208 = vld [vmem:[%s164 + $0x68] sm:$0xff]
        %v209 = vld [vmem:[%s164 + $0x70] sm:$0xff]
        %v210 = vld [vmem:[%s164 + $0x78] sm:$0xff]
        %v211 = vld [vmem:[%s164 + $0x80] sm:$0xff]
        %v212 = vld [vmem:[%s164 + $0x88] sm:$0xff]
        %v213 = vld [vmem:[%s164 + $0x90] sm:$0xff]
        %v214 = vld [vmem:[%s164 + $0x98] sm:$0xff]
        %v215 = vld [vmem:[%s164 + $0xa0] sm:$0xff]
        %v216 = vld [vmem:[%s164 + $0xa8] sm:$0xff]
        %v217 = vld [vmem:[%s164 + $0xb0] sm:$0xff]
        %v218 = vld [vmem:[%s164 + $0xb8] sm:$0xff]
        %v219 = vld [vmem:[%s164 + $0xc0] sm:$0xff]
        %v220 = vld [vmem:[%s164 + $0xc8] sm:$0xff]
        %v221 = vld [vmem:[%s164 + $0xd0] sm:$0xff]
        %v222 = vld [vmem:[%s164 + $0xd8] sm:$0xff]
        %v223 = vld [vmem:[%s164 + $0xe0] sm:$0xff]
        %v224 = vld [vmem:[%s164 + $0xe8] sm:$0xff]
        %v225 = vld [vmem:[%s164 + $0xf0] sm:$0xff]
        %v226 = vld [vmem:[%s164 + $0xf8] sm:$0xff]
        %v227 = vld [vmem:[%s1] sm:$0xf]
        %v228 = vld [vmem:[%s1 + $0x4] sm:$0xf]
        %v229 = vld [vmem:[%s1 + $0x8] sm:$0xf]
        %v230 = vld [vmem:[%s1 + $0xc] sm:$0xf]
        %v231 = vld [vmem:[%s1 + $0x10] sm:$0xf]
        %v232 = vld [vmem:[%s1 + $0x14] sm:$0xf]
        %v233 = vld [vmem:[%s1 + $0x18] sm:$0xf]
        %v234 = vld [vmem:[%s1 + $0x1c] sm:$0xf]
        %v235 = vld [vmem:[%s1 + $0x20] sm:$0xf]
        %v236 = vld [vmem:[%s1 + $0x24] sm:$0xf]
        %v237 = vld [vmem:[%s1 + $0x28] sm:$0xf]
        %v238 = vld [vmem:[%s1 + $0x2c] sm:$0xf]
        %v239 = vld [vmem:[%s1 + $0x30] sm:$0xf]
        %v240 = vld [vmem:[%s1 + $0x34] sm:$0xf]
        %v241 = vld [vmem:[%s1 + $0x38] sm:$0xf]
        %v242 = vld [vmem:[%s1 + $0x3c] sm:$0xf]
        %v243 = vld [vmem:[%s1 + $0x40] sm:$0xf]
        %v244 = vld [vmem:[%s1 + $0x44] sm:$0xf]
        %v245 = vld [vmem:[%s1 + $0x48] sm:$0xf]
        %v246 = vld [vmem:[%s1 + $0x4c] sm:$0xf]
        %v247 = vld [vmem:[%s1 + $0x50] sm:$0xf]
        %v248 = vld [vmem:[%s1 + $0x54] sm:$0xf]
        %v249 = vld [vmem:[%s1 + $0x58] sm:$0xf]
        %v250 = vld [vmem:[%s1 + $0x5c] sm:$0xf]
        %v251 = vld [vmem:[%s1 + $0x60] sm:$0xf]
        %v252 = vld [vmem:[%s1 + $0x64] sm:$0xf]
        %v253 = vld [vmem:[%s1 + $0x68] sm:$0xf]
        %v254 = vld [vmem:[%s1 + $0x6c] sm:$0xf]
        %v255 = vld [vmem:[%s1 + $0x70] sm:$0xf]
        %v256 = vld [vmem:[%s1 + $0x74] sm:$0xf]
        %v257 = vld [vmem:[%s1 + $0x78] sm:$0xf]
        %v258 = vld [vmem:[%s1 + $0x7c] sm:$0xf]
        %v259 = vld [vmem:[%s2] sm:$0x1]
        %v261 = vlaneseq
        %v262 = vshrl.u32 %v261, 7
        %v263 = vsub.s32 0, %v262
        %v264 = vrot.slane %v259, %v263
        %v298 = vunpack.c.l.b16 %v195
        %v299 = vunpack.c.h.b16 %v195
        %v300 = vunpack.c.l.b16 %v196
        %v301 = vunpack.c.h.b16 %v196
        %v302 = vunpack.c.l.b16 %v197
        %v303 = vunpack.c.h.b16 %v197
        %v304 = vunpack.c.l.b16 %v198
        %v305 = vunpack.c.h.b16 %v198
        %v306 = vunpack.c.l.b16 %v199
        %v307 = vunpack.c.h.b16 %v199
        %v308 = vunpack.c.l.b16 %v200
        %v309 = vunpack.c.h.b16 %v200
        %v310 = vunpack.c.l.b16 %v201
        %v311 = vunpack.c.h.b16 %v201
        %v312 = vunpack.c.l.b16 %v202
        %v313 = vunpack.c.h.b16 %v202
        %v314 = vunpack.c.l.b16 %v203
        %v315 = vunpack.c.h.b16 %v203
        %v316 = vunpack.c.l.b16 %v204
        %v317 = vunpack.c.h.b16 %v204
        %v318 = vunpack.c.l.b16 %v205
        %v319 = vunpack.c.h.b16 %v205
        %v320 = vunpack.c.l.b16 %v206
        %v321 = vunpack.c.h.b16 %v206
        %v322 = vunpack.c.l.b16 %v207
        %v323 = vunpack.c.h.b16 %v207
        %v324 = vunpack.c.l.b16 %v208
        %v325 = vunpack.c.h.b16 %v208
        %v326 = vunpack.c.l.b16 %v209
        %v327 = vunpack.c.h.b16 %v209
        %v328 = vunpack.c.l.b16 %v210
        %v329 = vunpack.c.h.b16 %v210
        %v330 = vunpack.c.l.b16 %v211
        %v331 = vunpack.c.h.b16 %v211
        %v332 = vunpack.c.l.b16 %v212
        %v333 = vunpack.c.h.b16 %v212
        %v334 = vunpack.c.l.b16 %v213
        %v335 = vunpack.c.h.b16 %v213
        %v336 = vunpack.c.l.b16 %v214
        %v337 = vunpack.c.h.b16 %v214
        %v338 = vunpack.c.l.b16 %v215
        %v339 = vunpack.c.h.b16 %v215
        %v340 = vunpack.c.l.b16 %v216
        %v341 = vunpack.c.h.b16 %v216
        %v342 = vunpack.c.l.b16 %v217
        %v343 = vunpack.c.h.b16 %v217
        %v344 = vunpack.c.l.b16 %v218
        %v345 = vunpack.c.h.b16 %v218
        %v346 = vunpack.c.l.b16 %v219
        %v347 = vunpack.c.h.b16 %v219
        %v348 = vunpack.c.l.b16 %v220
        %v349 = vunpack.c.h.b16 %v220
        %v350 = vunpack.c.l.b16 %v221
        %v351 = vunpack.c.h.b16 %v221
        %v352 = vunpack.c.l.b16 %v222
        %v353 = vunpack.c.h.b16 %v222
        %v354 = vunpack.c.l.b16 %v223
        %v355 = vunpack.c.h.b16 %v223
        %v356 = vunpack.c.l.b16 %v224
        %v357 = vunpack.c.h.b16 %v224
        %v358 = vunpack.c.l.b16 %v225
        %v359 = vunpack.c.h.b16 %v225
        %v360 = vunpack.c.l.b16 %v226
        %v361 = vunpack.c.h.b16 %v226
        %v362 = vpack.c.b16 %v300, %v298
        %v363 = vpack.c.b16 %v301, %v299
        %v364 = vpack.c.b16 %v304, %v302
        %v365 = vpack.c.b16 %v305, %v303
        %v366 = vpack.c.b16 %v308, %v306
        %v367 = vpack.c.b16 %v309, %v307
        %v368 = vpack.c.b16 %v312, %v310
        %v369 = vpack.c.b16 %v313, %v311
        %v370 = vpack.c.b16 %v316, %v314
        %v371 = vpack.c.b16 %v317, %v315
        %v372 = vpack.c.b16 %v320, %v318
        %v373 = vpack.c.b16 %v321, %v319
        %v374 = vpack.c.b16 %v324, %v322
        %v375 = vpack.c.b16 %v325, %v323
        %v376 = vpack.c.b16 %v328, %v326
        %v377 = vpack.c.b16 %v329, %v327
        %v378 = vpack.c.b16 %v332, %v330
        %v379 = vpack.c.b16 %v333, %v331
        %v380 = vpack.c.b16 %v336, %v334
        %v381 = vpack.c.b16 %v337, %v335
        %v382 = vpack.c.b16 %v340, %v338
        %v383 = vpack.c.b16 %v341, %v339
        %v384 = vpack.c.b16 %v344, %v342
        %v385 = vpack.c.b16 %v345, %v343
        %v386 = vpack.c.b16 %v348, %v346
        %v387 = vpack.c.b16 %v349, %v347
        %v388 = vpack.c.b16 %v352, %v350
        %v389 = vpack.c.b16 %v353, %v351
        %v390 = vpack.c.b16 %v356, %v354
        %v391 = vpack.c.b16 %v357, %v355
        %v392 = vpack.c.b16 %v360, %v358
        %v393 = vpack.c.b16 %v361, %v359
        %v458 = vunpack.c.l.b16 %v227
        %v459 = vunpack.c.l.b16 %v228
        %v460 = vunpack.c.l.b16 %v229
        %v461 = vunpack.c.l.b16 %v230
        %v462 = vunpack.c.l.b16 %v231
        %v463 = vunpack.c.l.b16 %v232
        %v464 = vunpack.c.l.b16 %v233
        %v465 = vunpack.c.l.b16 %v234
        %v466 = vunpack.c.l.b16 %v235
        %v467 = vunpack.c.l.b16 %v236
        %v468 = vunpack.c.l.b16 %v237
        %v469 = vunpack.c.l.b16 %v238
        %v470 = vunpack.c.l.b16 %v239
        %v471 = vunpack.c.l.b16 %v240
        %v472 = vunpack.c.l.b16 %v241
        %v473 = vunpack.c.l.b16 %v242
        %v474 = vunpack.c.l.b16 %v243
        %v475 = vunpack.c.l.b16 %v244
        %v476 = vunpack.c.l.b16 %v245
        %v477 = vunpack.c.l.b16 %v246
        %v478 = vunpack.c.l.b16 %v247
        %v479 = vunpack.c.l.b16 %v248
        %v480 = vunpack.c.l.b16 %v249
        %v481 = vunpack.c.l.b16 %v250
        %v482 = vunpack.c.l.b16 %v251
        %v483 = vunpack.c.l.b16 %v252
        %v484 = vunpack.c.l.b16 %v253
        %v485 = vunpack.c.l.b16 %v254
        %v486 = vunpack.c.l.b16 %v255
        %v487 = vunpack.c.l.b16 %v256
        %v488 = vunpack.c.l.b16 %v257
        %v489 = vunpack.c.l.b16 %v258
        %v490 = vpack.c.b16 %v459, %v458
        %v491 = vpack.c.b16 %v461, %v460
        %v492 = vpack.c.b16 %v463, %v462
        %v493 = vpack.c.b16 %v465, %v464
        %v494 = vpack.c.b16 %v467, %v466
        %v495 = vpack.c.b16 %v469, %v468
        %v496 = vpack.c.b16 %v471, %v470
        %v497 = vpack.c.b16 %v473, %v472
        %v498 = vpack.c.b16 %v475, %v474
        %v499 = vpack.c.b16 %v477, %v476
        %v500 = vpack.c.b16 %v479, %v478
        %v501 = vpack.c.b16 %v481, %v480
        %v502 = vpack.c.b16 %v483, %v482
        %v503 = vpack.c.b16 %v485, %v484
        %v504 = vpack.c.b16 %v487, %v486
        %v505 = vpack.c.b16 %v489, %v488
        %522 = vmatprep.subr.bf16.mxu0 0
        %523 = vmatpush1.bf16.msra.mxu0 %v497
        %524 = vmatprep.subr.bf16.mxu0 0
        %525 = vmatpush1.bf16.msra.mxu0 %v496
        %526 = vmatprep.subr.bf16.mxu0 0
        %527 = vmatpush1.bf16.msra.mxu0 %v495
        %528 = vmatprep.subr.bf16.mxu0 0
        %529 = vmatpush1.bf16.msra.mxu0 %v494
        %530 = vmatprep.subr.bf16.mxu0 0
        %531 = vmatpush1.bf16.msra.mxu0 %v493
        %532 = vmatprep.subr.bf16.mxu0 0
        %533 = vmatpush1.bf16.msra.mxu0 %v492
        %534 = vmatprep.subr.bf16.mxu0 0
        %535 = vmatpush1.bf16.msra.mxu0 %v491
        %536 = vmatprep.subr.bf16.mxu0 0
        %537 = vmatpush1.bf16.msra.mxu0 %v490
        %538 = vmatprep.subr.bf16.mxu0 0
        %539 = vmatpush2.bf16.msra.mxu0 %v505
        %540 = vmatprep.subr.bf16.mxu0 0
        %541 = vmatpush2.bf16.msra.mxu0 %v504
        %542 = vmatprep.subr.bf16.mxu0 0
        %543 = vmatpush2.bf16.msra.mxu0 %v503
        %544 = vmatprep.subr.bf16.mxu0 0
        %545 = vmatpush2.bf16.msra.mxu0 %v502
        %546 = vmatprep.subr.bf16.mxu0 0
        %547 = vmatpush2.bf16.msra.mxu0 %v501
        %548 = vmatprep.subr.bf16.mxu0 0
        %549 = vmatpush2.bf16.msra.mxu0 %v500
        %550 = vmatprep.subr.bf16.mxu0 0
        %551 = vmatpush2.bf16.msra.mxu0 %v499
        %552 = vmatprep.subr.bf16.mxu0 0
        %553 = vmatpush2.bf16.msra.mxu0 %v498
        %554 = vmatprep.mubr.bf16.mxu0 %v363
        %555 = vmatmul.mubr.bf16.gmra.mxu0 %v362
        %v556 = vpop.f32.mrf.mxu0
        %v557 = vadd.f32 %v264, %v556
        %v558 = vpop.f32.mrf.mxu0
        %v559 = vpop.f32.mrf.mxu0
        %v560 = vadd.f32 %v264, %v559
        %v561 = vpop.f32.mrf.mxu0
        %562 = vmatprep.mubr.bf16.mxu0 %v365
        %563 = vmatmul.mubr.bf16.gmra.mxu0 %v364
        %v564 = vpop.f32.mrf.mxu0
        %v565 = vadd.f32 %v264, %v564
        %v566 = vpop.f32.mrf.mxu0
        %v567 = vpop.f32.mrf.mxu0
        %v568 = vadd.f32 %v264, %v567
        %v569 = vpop.f32.mrf.mxu0
        %570 = vmatprep.mubr.bf16.mxu0 %v367
        %571 = vmatmul.mubr.bf16.gmra.mxu0 %v366
        %v572 = vpop.f32.mrf.mxu0
        %v573 = vadd.f32 %v264, %v572
        %v574 = vpop.f32.mrf.mxu0
        %v575 = vpop.f32.mrf.mxu0
        %v576 = vadd.f32 %v264, %v575
        %v577 = vpop.f32.mrf.mxu0
        %578 = vmatprep.mubr.bf16.mxu0 %v369
        %579 = vmatmul.mubr.bf16.gmra.mxu0 %v368
        %v580 = vpop.f32.mrf.mxu0
        %v581 = vadd.f32 %v264, %v580
        %v582 = vpop.f32.mrf.mxu0
        %v583 = vpop.f32.mrf.mxu0
        %v584 = vadd.f32 %v264, %v583
        %v585 = vpop.f32.mrf.mxu0
        %586 = vmatprep.mubr.bf16.mxu0 %v371
        %587 = vmatmul.mubr.bf16.gmra.mxu0 %v370
        %v588 = vpop.f32.mrf.mxu0
        %v589 = vadd.f32 %v264, %v588
        %v590 = vpop.f32.mrf.mxu0
        %v591 = vpop.f32.mrf.mxu0
        %v592 = vadd.f32 %v264, %v591
        %v593 = vpop.f32.mrf.mxu0
        %594 = vmatprep.mubr.bf16.mxu0 %v373
        %595 = vmatmul.mubr.bf16.gmra.mxu0 %v372
        %v596 = vpop.f32.mrf.mxu0
        %v597 = vadd.f32 %v264, %v596
        %v598 = vpop.f32.mrf.mxu0
        %v599 = vpop.f32.mrf.mxu0
        %v600 = vadd.f32 %v264, %v599
        %v601 = vpop.f32.mrf.mxu0
        %602 = vmatprep.mubr.bf16.mxu0 %v375
        %603 = vmatmul.mubr.bf16.gmra.mxu0 %v374
        %v604 = vpop.f32.mrf.mxu0
        %v605 = vadd.f32 %v264, %v604
        %v606 = vpop.f32.mrf.mxu0
        %v607 = vpop.f32.mrf.mxu0
        %v608 = vadd.f32 %v264, %v607
        %v609 = vpop.f32.mrf.mxu0
        %610 = vmatprep.mubr.bf16.mxu0 %v377
        %611 = vmatmul.mubr.bf16.gmra.mxu0 %v376
        %v612 = vpop.f32.mrf.mxu0
        %v613 = vadd.f32 %v264, %v612
        %v614 = vpop.f32.mrf.mxu0
        %v615 = vpop.f32.mrf.mxu0
        %v616 = vadd.f32 %v264, %v615
        %v617 = vpop.f32.mrf.mxu0
        %618 = vmatprep.mubr.bf16.mxu0 %v379
        %619 = vmatmul.mubr.bf16.gmra.mxu0 %v378
        %v620 = vpop.f32.mrf.mxu0
        %v621 = vadd.f32 %v264, %v620
        %v622 = vpop.f32.mrf.mxu0
        %v623 = vpop.f32.mrf.mxu0
        %v624 = vadd.f32 %v264, %v623
        %v625 = vpop.f32.mrf.mxu0
        %626 = vmatprep.mubr.bf16.mxu0 %v381
        %627 = vmatmul.mubr.bf16.gmra.mxu0 %v380
        %v628 = vpop.f32.mrf.mxu0
        %v629 = vadd.f32 %v264, %v628
        %v630 = vpop.f32.mrf.mxu0
        %v631 = vpop.f32.mrf.mxu0
        %v632 = vadd.f32 %v264, %v631
        %v633 = vpop.f32.mrf.mxu0
        %634 = vmatprep.mubr.bf16.mxu0 %v383
        %635 = vmatmul.mubr.bf16.gmra.mxu0 %v382
        %v636 = vpop.f32.mrf.mxu0
        %v637 = vadd.f32 %v264, %v636
        %v638 = vpop.f32.mrf.mxu0
        %v639 = vpop.f32.mrf.mxu0
        %v640 = vadd.f32 %v264, %v639
        %v641 = vpop.f32.mrf.mxu0
        %642 = vmatprep.mubr.bf16.mxu0 %v385
        %643 = vmatmul.mubr.bf16.gmra.mxu0 %v384
        %v644 = vpop.f32.mrf.mxu0
        %v645 = vadd.f32 %v264, %v644
        %v646 = vpop.f32.mrf.mxu0
        %v647 = vpop.f32.mrf.mxu0
        %v648 = vadd.f32 %v264, %v647
        %v649 = vpop.f32.mrf.mxu0
        %650 = vmatprep.mubr.bf16.mxu0 %v387
        %651 = vmatmul.mubr.bf16.gmra.mxu0 %v386
        %v652 = vpop.f32.mrf.mxu0
        %v653 = vadd.f32 %v264, %v652
        %v654 = vpop.f32.mrf.mxu0
        %v655 = vpop.f32.mrf.mxu0
        %v656 = vadd.f32 %v264, %v655
        %v657 = vpop.f32.mrf.mxu0
        %658 = vmatprep.mubr.bf16.mxu0 %v389
        %659 = vmatmul.mubr.bf16.gmra.mxu0 %v388
        %v660 = vpop.f32.mrf.mxu0
        %v661 = vadd.f32 %v264, %v660
        %v662 = vpop.f32.mrf.mxu0
        %v663 = vpop.f32.mrf.mxu0
        %v664 = vadd.f32 %v264, %v663
        %v665 = vpop.f32.mrf.mxu0
        %666 = vmatprep.mubr.bf16.mxu0 %v391
        %667 = vmatmul.mubr.bf16.gmra.mxu0 %v390
        %v668 = vpop.f32.mrf.mxu0
        %v669 = vadd.f32 %v264, %v668
        %v670 = vpop.f32.mrf.mxu0
        %v671 = vpop.f32.mrf.mxu0
        %v672 = vadd.f32 %v264, %v671
        %v673 = vpop.f32.mrf.mxu0
        %674 = vmatprep.mubr.bf16.mxu0 %v393
        %675 = vmatmul.mubr.bf16.gmra.mxu0 %v392
        %v676 = vpop.f32.mrf.mxu0
        %v677 = vadd.f32 %v264, %v676
        %v678 = vpop.f32.mrf.mxu0
        %v679 = vpop.f32.mrf.mxu0
        %v680 = vadd.f32 %v264, %v679
        %v681 = vpop.f32.mrf.mxu0
        %682 = vdwg.mxu0
        %v683 = vpack.c.bf16 %v560, %v557
        %v684 = vpack.c.bf16 %v568, %v565
        %v685 = vpack.c.bf16 %v576, %v573
        %v686 = vpack.c.bf16 %v584, %v581
        %v687 = vpack.c.bf16 %v592, %v589
        %v688 = vpack.c.bf16 %v600, %v597
        %v689 = vpack.c.bf16 %v608, %v605
        %v690 = vpack.c.bf16 %v616, %v613
        %v691 = vpack.c.bf16 %v624, %v621
        %v692 = vpack.c.bf16 %v632, %v629
        %v693 = vpack.c.bf16 %v640, %v637
        %v694 = vpack.c.bf16 %v648, %v645
        %v695 = vpack.c.bf16 %v656, %v653
        %v696 = vpack.c.bf16 %v664, %v661
        %v697 = vpack.c.bf16 %v672, %v669
        %v698 = vpack.c.bf16 %v680, %v677
        %v715 = vunpack.c.l.b16 %v683
        %v716 = vunpack.c.h.b16 %v683
        %v717 = vunpack.c.l.b16 %v684
        %v718 = vunpack.c.h.b16 %v684
        %v719 = vunpack.c.l.b16 %v685
        %v720 = vunpack.c.h.b16 %v685
        %v721 = vunpack.c.l.b16 %v686
        %v722 = vunpack.c.h.b16 %v686
        %v723 = vunpack.c.l.b16 %v687
        %v724 = vunpack.c.h.b16 %v687
        %v725 = vunpack.c.l.b16 %v688
        %v726 = vunpack.c.h.b16 %v688
        %v727 = vunpack.c.l.b16 %v689
        %v728 = vunpack.c.h.b16 %v689
        %v729 = vunpack.c.l.b16 %v690
        %v730 = vunpack.c.h.b16 %v690
        %v731 = vunpack.c.l.b16 %v691
        %v732 = vunpack.c.h.b16 %v691
        %v733 = vunpack.c.l.b16 %v692
        %v734 = vunpack.c.h.b16 %v692
        %v735 = vunpack.c.l.b16 %v693
        %v736 = vunpack.c.h.b16 %v693
        %v737 = vunpack.c.l.b16 %v694
        %v738 = vunpack.c.h.b16 %v694
        %v739 = vunpack.c.l.b16 %v695
        %v740 = vunpack.c.h.b16 %v695
        %v741 = vunpack.c.l.b16 %v696
        %v742 = vunpack.c.h.b16 %v696
        %v743 = vunpack.c.l.b16 %v697
        %v744 = vunpack.c.h.b16 %v697
        %v745 = vunpack.c.l.b16 %v698
        %v746 = vunpack.c.h.b16 %v698
        %v747 = vpack.c.b16 %v715, %v715
        %v748 = vpack.c.b16 %v716, %v716
        %v749 = vpack.c.b16 %v717, %v717
        %v750 = vpack.c.b16 %v718, %v718
        %v751 = vpack.c.b16 %v719, %v719
        %v752 = vpack.c.b16 %v720, %v720
        %v753 = vpack.c.b16 %v721, %v721
        %v754 = vpack.c.b16 %v722, %v722
        %v755 = vpack.c.b16 %v723, %v723
        %v756 = vpack.c.b16 %v724, %v724
        %v757 = vpack.c.b16 %v725, %v725
        %v758 = vpack.c.b16 %v726, %v726
        %v759 = vpack.c.b16 %v727, %v727
        %v760 = vpack.c.b16 %v728, %v728
        %v761 = vpack.c.b16 %v729, %v729
        %v762 = vpack.c.b16 %v730, %v730
        %v763 = vpack.c.b16 %v731, %v731
        %v764 = vpack.c.b16 %v732, %v732
        %v765 = vpack.c.b16 %v733, %v733
        %v766 = vpack.c.b16 %v734, %v734
        %v767 = vpack.c.b16 %v735, %v735
        %v768 = vpack.c.b16 %v736, %v736
        %v769 = vpack.c.b16 %v737, %v737
        %v770 = vpack.c.b16 %v738, %v738
        %v771 = vpack.c.b16 %v739, %v739
        %v772 = vpack.c.b16 %v740, %v740
        %v773 = vpack.c.b16 %v741, %v741
        %v774 = vpack.c.b16 %v742, %v742
        %v775 = vpack.c.b16 %v743, %v743
        %v776 = vpack.c.b16 %v744, %v744
        %v777 = vpack.c.b16 %v745, %v745
        %v778 = vpack.c.b16 %v746, %v746
        %vm811 = vcmask 257024
        %812 = vst.msk [vmem:[%s192] sm:$0xf] %vm811, %v747
        %813 = vst.msk [vmem:[%s192 + $0x4] sm:$0xf] %vm811, %v748
        %814 = vst.msk [vmem:[%s192 + $0x8] sm:$0xf] %vm811, %v749
        %815 = vst.msk [vmem:[%s192 + $0xc] sm:$0xf] %vm811, %v750
        %816 = vst.msk [vmem:[%s192 + $0x10] sm:$0xf] %vm811, %v751
        %817 = vst.msk [vmem:[%s192 + $0x14] sm:$0xf] %vm811, %v752
        %818 = vst.msk [vmem:[%s192 + $0x18] sm:$0xf] %vm811, %v753
        %819 = vst.msk [vmem:[%s192 + $0x1c] sm:$0xf] %vm811, %v754
        %820 = vst.msk [vmem:[%s192 + $0x20] sm:$0xf] %vm811, %v755
        %821 = vst.msk [vmem:[%s192 + $0x24] sm:$0xf] %vm811, %v756
        %822 = vst.msk [vmem:[%s192 + $0x28] sm:$0xf] %vm811, %v757
        %823 = vst.msk [vmem:[%s192 + $0x2c] sm:$0xf] %vm811, %v758
        %824 = vst.msk [vmem:[%s192 + $0x30] sm:$0xf] %vm811, %v759
        %825 = vst.msk [vmem:[%s192 + $0x34] sm:$0xf] %vm811, %v760
        %826 = vst.msk [vmem:[%s192 + $0x38] sm:$0xf] %vm811, %v761
        %827 = vst.msk [vmem:[%s192 + $0x3c] sm:$0xf] %vm811, %v762
        %828 = vst.msk [vmem:[%s192 + $0x40] sm:$0xf] %vm811, %v763
        %829 = vst.msk [vmem:[%s192 + $0x44] sm:$0xf] %vm811, %v764
        %830 = vst.msk [vmem:[%s192 + $0x48] sm:$0xf] %vm811, %v765
        %831 = vst.msk [vmem:[%s192 + $0x4c] sm:$0xf] %vm811, %v766
        %832 = vst.msk [vmem:[%s192 + $0x50] sm:$0xf] %vm811, %v767
        %833 = vst.msk [vmem:[%s192 + $0x54] sm:$0xf] %vm811, %v768
        %834 = vst.msk [vmem:[%s192 + $0x58] sm:$0xf] %vm811, %v769
        %835 = vst.msk [vmem:[%s192 + $0x5c] sm:$0xf] %vm811, %v770
        %836 = vst.msk [vmem:[%s192 + $0x60] sm:$0xf] %vm811, %v771
        %837 = vst.msk [vmem:[%s192 + $0x64] sm:$0xf] %vm811, %v772
        %838 = vst.msk [vmem:[%s192 + $0x68] sm:$0xf] %vm811, %v773
        %839 = vst.msk [vmem:[%s192 + $0x6c] sm:$0xf] %vm811, %v774
        %840 = vst.msk [vmem:[%s192 + $0x70] sm:$0xf] %vm811, %v775
        %841 = vst.msk [vmem:[%s192 + $0x74] sm:$0xf] %vm811, %v776
        %842 = vst.msk [vmem:[%s192 + $0x78] sm:$0xf] %vm811, %v777
        %843 = vst.msk [vmem:[%s192 + $0x7c] sm:$0xf] %vm811, %v778
        %s844 = smul.u32 32, %s17
        %p845 = scmp.lt.s32.totalorder %s844, 63
        %s846 = scalar_select %p845, %s844, 63
        %s847 = smul.addr %s846, 4
        %s848 = scalar_lea.vmem %s3, %s847
        // Predicated region
        $region37: #{tpu_custom_call.1} parent=31 // pred_check
          %p849 = pneg %p103
        $region38: #{tpu_custom_call.1} parent=31 // pred_check_branch
          %851 = sbr.rel (%p849) target = $region40
        $region39: #{tpu_custom_call.1} parent=31 // pred_region
          %s852 = smul.u32 32, %s17
        $region40: #{tpu_custom_call.1} parent=31 // pred_fallthru
          _
      $region32: #{tpu_custom_call.1} parent=5 // pred_fallthru
        _
      %p853 = scmp.le.s32.totalorder 2, %s12
      // Predicated region
      $region41: #{tpu_custom_call.1} parent=5 // pred_check
        %p854 = pneg %p853
      $region42: #{tpu_custom_call.1} parent=5 // pred_check_branch
        %856 = sbr.rel (%p854) target = $region44
      $region43: #{tpu_custom_call.1} parent=5 // pred_region
        %s857 = ssub.s32 %s12, 2
        // Predicated region
        $region45: #{tpu_custom_call.1} parent=43 // pred_check
          %p858 = pneg %p109
        $region46: #{tpu_custom_call.1} parent=43 // pred_check_branch
          %860 = sbr.rel (%p858) target = $region48
        $region47: #{tpu_custom_call.1} parent=43 // pred_region
          %s861 = smul.u32 32, %s18
          %p862 = scmp.lt.s32.totalorder %s861, 63
          %s863 = scalar_select %p862, %s861, 63
          %s864 = smul.addr %s863, 4
          %s865 = scalar_lea.vmem %s3, %s864
        $region48: #{tpu_custom_call.1} parent=43 // pred_fallthru
          _
      $region44: #{tpu_custom_call.1} parent=5 // pred_fallthru
        _
    $region6: #{tpu_custom_call.1} parent=1 // loop_footer
      %s16 = sadd.s32 1, %s12
    $region7: #{tpu_custom_call.1} parent=1 // loop_footer_branch
      %11 = sbr.rel target = $region3
    $region8: #{tpu_custom_call.1} parent=1 // loop_exit
      _
    %866 = vsyncpa [#allocation3], 1
    %s867 = scalar_lea.sflag [#allocation3], 1
    %868 = vsyncpa %s867, 1

</llo_original>
